<compile_context>
chip_gen: v7x
topology: tpu7x:2x2x1
jax: 0.10.0
libtpu: 0.0.40
codegen_flags: <defaults>
</compile_context>

<pallas_src>
import functools

import jax
import jax.numpy as jnp
from jax.experimental import pallas as pl
from jax.experimental.pallas import tpu as pltpu


LANE = 128      # TPU lane width (last dim of a vreg)
SUBLANE = 8     # TPU sublane width (second-to-last dim of a vreg)


def _round_up(n: int, m: int) -> int:
    return ((n + m - 1) // m) * m


def _cdiv(a: int, b: int) -> int:
    return (a + b - 1) // b


def nn_gfe_kernel(x_ref, w1_ref, b1_ref, w2_ref, b2_ref, y_ref):
    # h_input = x @ W1 + b1   (f32 accumulation on the MXU)
    h = jnp.dot(x_ref[...], w1_ref[...], preferred_element_type=jnp.float32)
    h = h + b1_ref[...].astype(jnp.float32)        # (TB, H) + (1, H) broadcast
    # sigmoid(h) == 0.5 * tanh(h / 2) + 0.5  -> exactly one EUP transcendental
    # (avoids exp followed by a full-precision divide).  Kept in f32 so it is
    # safe on v5e (no bf16 VPU/EUP there).
    h = 0.5 * jnp.tanh(0.5 * h) + 0.5
    # y_pred = h_output @ W2 + b2  (cast back to weight dtype for the MXU
    # input; no-op for f32, bf16 path for bf16 weights)
    h = h.astype(w2_ref.dtype)
    y = jnp.dot(h, w2_ref[...], preferred_element_type=jnp.float32)
    y = y + b2_ref[...].astype(jnp.float32)        # (TB, O) + (1, O) broadcast
    y_ref[...] = y.astype(y_ref.dtype)


@functools.partial(jax.jit, static_argnames=("block_batch", "out_dtype"))
def nn_gfe_forward(x, w1, b1, w2, b2, *, block_batch=4096, out_dtype=None):
    """Forward pass of NN_GFE: sigmoid(x @ w1 + b1) @ w2 + b2."""
    batch, n_input = x.shape
    n_hidden, n_output = w2.shape
    out_dtype = x.dtype if out_dtype is None else jnp.dtype(out_dtype)

    # ---- Adaptive batch tiling ---------------------------------------------
    # Keep >= 2 grid steps for medium/large batches so the "parallel" axis can
    # shard across v7x's two TensorCores; split the batch evenly so padding is
    # at most a handful of rows per step (not up to a full tile of zeros).
    min_steps = 2 if batch >= 128 else 1
    n_steps = max(_cdiv(batch, block_batch), min_steps)
    tb = _round_up(_cdiv(batch, n_steps), SUBLANE)
    batch_p = _round_up(batch, tb)
    if batch_p != batch:
        x = jnp.pad(x, ((0, batch_p - batch), (0, 0)))
    grid = (batch_p // tb,)

    # Weights / biases: full-extent blocks with constant index_map -> loaded
    # into VMEM once and kept resident across the batch grid.
    resident = lambda arr: pl.BlockSpec(arr.shape, lambda i: (0, 0))

    itemsize = lambda a: a.size * a.dtype.itemsize
    cost = pl.CostEstimate(
        flops=2 * batch_p * (n_input * n_hidden + n_hidden * n_output),
        transcendentals=batch_p * n_hidden,
        bytes_accessed=(itemsize(x) + itemsize(w1) + itemsize(b1)
                        + itemsize(w2) + itemsize(b2)
                        + batch_p * n_output * jnp.dtype(out_dtype).itemsize),
    )

    y = pl.pallas_call(
        nn_gfe_kernel,
        out_shape=jax.ShapeDtypeStruct((batch_p, n_output), out_dtype),
        grid=grid,
        in_specs=[
            pl.BlockSpec((tb, n_input), lambda i: (i, 0)),  # x: streamed per tile
            resident(w1),                                    # weights: loaded once
            resident(b1),
            resident(w2),
            resident(b2),
        ],
        # Output block's last dim equals the full (narrow) array dim -> legal,
        # and no lane padding means ~8x less output HBM traffic than before.
        out_specs=pl.BlockSpec((tb, n_output), lambda i: (i, 0)),
        compiler_params=pltpu.CompilerParams(
            dimension_semantics=("parallel",),   # megacore sharding on v7x
        ),
        cost_estimate=cost,
    )(x, w1, b1, w2, b2)

    # Strip batch padding (at most a few rows).
    return y[:batch] if batch_p != batch else y


def reference_forward(x, w1, b1, w2, b2):
    h = jax.nn.sigmoid(x.astype(jnp.float32) @ w1.astype(jnp.float32) + b1)
    return h @ w2.astype(jnp.float32) + b2


if __name__ == "__main__":
    # Small shapes implied by NN_GFE(n_input, n_hidden, n_output).
    n_input, n_hidden, n_output = 32, 64, 16

    key = jax.random.PRNGKey(0)
    kx, kw1, kb1, kw2, kb2 = jax.random.split(key, 5)

    # Deterministic parameter init (torch.nn.Linear-style uniform bounds),
    # stored as (in, out) for x @ W.
    bound1 = 1.0 / jnp.sqrt(n_input)
    w1 = jax.random.uniform(kw1, (n_input, n_hidden), jnp.float32, -bound1, bound1)
    b1 = jax.random.uniform(kb1, (1, n_hidden), jnp.float32, -bound1, bound1)

    bound2 = 1.0 / jnp.sqrt(n_hidden)
    w2 = jax.random.uniform(kw2, (n_hidden, n_output), jnp.float32, -bound2, bound2)
    b2 = jax.random.uniform(kb2, (1, n_output), jnp.float32, -bound2, bound2)

    # Case 1: batch divisible by the sublane/tile (8 rows), single grid step.
    x8 = jax.random.normal(kx, (8, n_input), dtype=jnp.float32)
    y8 = jax.block_until_ready(nn_gfe_forward(x8, w1, b1, w2, b2))
    y8_ref = reference_forward(x8, w1, b1, w2, b2)
    assert y8.shape == (8, n_output)
    assert jnp.allclose(y8, y8_ref, atol=1e-5, rtol=1e-5)

    # Case 2: ragged batch (exercises the padding / remainder path).
    x13 = jax.random.normal(jax.random.PRNGKey(1), (13, n_input), dtype=jnp.float32)
    y13 = jax.block_until_ready(nn_gfe_forward(x13, w1, b1, w2, b2))
    y13_ref = reference_forward(x13, w1, b1, w2, b2)
    assert y13.shape == (13, n_output)
    assert jnp.allclose(y13, y13_ref, atol=1e-5, rtol=1e-5)

    # Case 3: larger ragged batch (>=128) -> exercises the multi-step grid
    # (two tiles, adaptive tile size, small batch padding).
    x200 = jax.random.normal(jax.random.PRNGKey(2), (200, n_input), dtype=jnp.float32)
    y200 = jax.block_until_ready(nn_gfe_forward(x200, w1, b1, w2, b2))
    y200_ref = reference_forward(x200, w1, b1, w2, b2)
    assert y200.shape == (200, n_output)
    assert jnp.allclose(y200, y200_ref, atol=1e-5, rtol=1e-5)

    print("KERNEL_OK")
</pallas_src>

<mosaic_0001>
module attributes {stable_mosaic.version = 11 : i64} {
  func.func @nn_gfe_kernel(%arg0: i32, %arg1: memref<8x32xf32, #tpu.memory_space<vmem>>, %arg2: memref<32x64xf32, #tpu.memory_space<vmem>>, %arg3: memref<1x64xf32, #tpu.memory_space<vmem>>, %arg4: memref<64x16xf32, #tpu.memory_space<vmem>>, %arg5: memref<1x16xf32, #tpu.memory_space<vmem>>, %arg6: memref<8x16xf32, #tpu.memory_space<vmem>>) attributes {dimension_semantics = [#tpu.dimension_semantics<parallel>], iteration_bounds = array<i64: 1>, scalar_prefetch = 0 : i64, scratch_operands = 0 : i64, tpu.core_type = #tpu.core_type<tc>, window_params = [{transform_indices = @transform_0, window_bounds = array<i64: 8, 32>}, {pipeline_mode = #tpu.pipeline_mode<synchronous>, transform_indices = @transform_1, window_bounds = array<i64: 32, 64>}, {pipeline_mode = #tpu.pipeline_mode<synchronous>, transform_indices = @transform_2, window_bounds = array<i64: 1, 64>}, {pipeline_mode = #tpu.pipeline_mode<synchronous>, transform_indices = @transform_3, window_bounds = array<i64: 64, 16>}, {pipeline_mode = #tpu.pipeline_mode<synchronous>, transform_indices = @transform_4, window_bounds = array<i64: 1, 16>}, {transform_indices = @transform_5, window_bounds = array<i64: 8, 16>}]} {
    %c0 = arith.constant 0 : index
    %c0_0 = arith.constant 0 : index
    %0 = vector.load %arg1[%c0, %c0_0] : memref<8x32xf32, #tpu.memory_space<vmem>>, vector<8x32xf32>
    %c0_1 = arith.constant 0 : index
    %c0_2 = arith.constant 0 : index
    %1 = vector.load %arg2[%c0_1, %c0_2] : memref<32x64xf32, #tpu.memory_space<vmem>>, vector<32x64xf32>
    %cst = arith.constant dense<0.000000e+00> : vector<8x64xf32>
    %2 = tpu.matmul %0, %1, %cst {dimension_numbers = #tpu.dot_dimension_numbers<[1], [0], [0], [1], [0, 0, 1, 1], [], []>} : vector<8x32xf32>, vector<32x64xf32>, vector<8x64xf32> -> vector<8x64xf32>
    %c0_3 = arith.constant 0 : index
    %c0_4 = arith.constant 0 : index
    %3 = vector.load %arg3[%c0_3, %c0_4] : memref<1x64xf32, #tpu.memory_space<vmem>>, vector<1x64xf32>
    %4 = vector.broadcast %3 : vector<1x64xf32> to vector<8x64xf32>
    %5 = arith.addf %2, %4 : vector<8x64xf32>
    %cst_5 = arith.constant 5.000000e-01 : f32
    %6 = vector.broadcast %cst_5 : f32 to vector<8x64xf32>
    %7 = arith.mulf %6, %5 : vector<8x64xf32>
    %8 = math.tanh %7 : vector<8x64xf32>
    %cst_6 = arith.constant 5.000000e-01 : f32
    %9 = vector.broadcast %cst_6 : f32 to vector<8x64xf32>
    %10 = arith.mulf %9, %8 : vector<8x64xf32>
    %cst_7 = arith.constant 5.000000e-01 : f32
    %11 = vector.broadcast %cst_7 : f32 to vector<8x64xf32>
    %12 = arith.addf %10, %11 : vector<8x64xf32>
    %c0_8 = arith.constant 0 : index
    %c0_9 = arith.constant 0 : index
    %13 = vector.load %arg4[%c0_8, %c0_9] : memref<64x16xf32, #tpu.memory_space<vmem>>, vector<64x16xf32>
    %cst_10 = arith.constant dense<0.000000e+00> : vector<8x16xf32>
    %14 = tpu.matmul %12, %13, %cst_10 {dimension_numbers = #tpu.dot_dimension_numbers<[1], [0], [0], [1], [0, 0, 1, 1], [], []>} : vector<8x64xf32>, vector<64x16xf32>, vector<8x16xf32> -> vector<8x16xf32>
    %c0_11 = arith.constant 0 : index
    %c0_12 = arith.constant 0 : index
    %15 = vector.load %arg5[%c0_11, %c0_12] : memref<1x16xf32, #tpu.memory_space<vmem>>, vector<1x16xf32>
    %16 = vector.broadcast %15 : vector<1x16xf32> to vector<8x16xf32>
    %17 = arith.addf %14, %16 : vector<8x16xf32>
    %c0_13 = arith.constant 0 : index
    %c0_14 = arith.constant 0 : index
    %18 = vector.load %arg6[%c0_13, %c0_14] : memref<8x16xf32, #tpu.memory_space<vmem>>, vector<8x16xf32>
    tpu.vector_store %arg6[%c0_13, %c0_14], %17 {strides = array<i32>} : memref<8x16xf32, #tpu.memory_space<vmem>>, vector<8x16xf32>,
    return
  }
  func.func @transform_0(%arg0: i32) -> (i32, i32) {
    %c0_i32 = arith.constant 0 : i32
    %c0_i32_0 = arith.constant 0 : i32
    return %arg0, %c0_i32 : i32, i32
  }
  func.func @transform_1(%arg0: i32) -> (i32, i32) {
    %c0_i32 = arith.constant 0 : i32
    %c0_i32_0 = arith.constant 0 : i32
    %c0_i32_1 = arith.constant 0 : i32
    return %c0_i32, %c0_i32_0 : i32, i32
  }
  func.func @transform_2(%arg0: i32) -> (i32, i32) {
    %c0_i32 = arith.constant 0 : i32
    %c0_i32_0 = arith.constant 0 : i32
    %c0_i32_1 = arith.constant 0 : i32
    return %c0_i32, %c0_i32_0 : i32, i32
  }
  func.func @transform_3(%arg0: i32) -> (i32, i32) {
    %c0_i32 = arith.constant 0 : i32
    %c0_i32_0 = arith.constant 0 : i32
    %c0_i32_1 = arith.constant 0 : i32
    return %c0_i32, %c0_i32_0 : i32, i32
  }
  func.func @transform_4(%arg0: i32) -> (i32, i32) {
    %c0_i32 = arith.constant 0 : i32
    %c0_i32_0 = arith.constant 0 : i32
    %c0_i32_1 = arith.constant 0 : i32
    return %c0_i32, %c0_i32_0 : i32, i32
  }
  func.func @transform_5(%arg0: i32) -> (i32, i32) {
    %c0_i32 = arith.constant 0 : i32
    %c0_i32_0 = arith.constant 0 : i32
    return %arg0, %c0_i32 : i32, i32
  }
}

</mosaic_0001>

<llo_original>
// kernel: nn_gfe_forward.1
$region0: #{nn_gfe_forward.1}
  #allocation0 [shape = 'u32[]', space=smem, size = 0x4, offset = 0x4, fixed_abs, tag = 'smem constant byte address 0x4 - core index']
  #allocation1 [shape = 'u32[144,128]{1,0:T(1,128)}', space=vmem, size = 0x12000, scoped, tag = 'internal scratch']
  %s0 = inlined_call_operand.vmem [shape: f32[8,32], index: 0, kind: input, shape index: {}]
  %s1 = inlined_call_operand.vmem [shape: f32[32,64], index: 1, kind: input, shape index: {}]
  %s2 = inlined_call_operand.vmem [shape: f32[1,64], index: 2, kind: input, shape index: {}]
  %s3 = inlined_call_operand.vmem [shape: f32[64,16], index: 3, kind: input, shape index: {}]
  %s4 = inlined_call_operand.vmem [shape: f32[1,16], index: 4, kind: input, shape index: {}]
  %s5 = inlined_call_operand.hbm [shape: f32[8,16], index: 5, kind: output, shape index: {}]
  %s6 = sld [smem:[#allocation0]]
  $region30: #{nn_gfe_forward.1} parent=0
    _
  %s8 = ssub.s32 1, %s6
  %s9 = scalar_select 0, %s8, %s6
  $region1: #{nn_gfe_forward.1} parent=0
    #allocation2 [shape = 'u8[4096]{0}', space=vmem, size = 0x1000, scoped, tag = 'output window, operand 0, single buffered']
    #allocation3 [shape = 's32[1]{0}', space=sflag, size = 0x4, scoped, tag = 'scoped memory for nn_gfe_forward.1']
    %10 = vsyncpa [#allocation3], 0
    // Predicated region
    $region2: #{nn_gfe_forward.1} parent=1 // pred_check
      _
    $region3: #{nn_gfe_forward.1} parent=1 // pred_check_branch
      %12 = sbr.rel (0) target = $region5
    $region4: #{nn_gfe_forward.1} parent=1 // pred_region
      _
    $region5: #{nn_gfe_forward.1} parent=1 // pred_fallthru
      _
    // Predicated region
    $region6: #{nn_gfe_forward.1} parent=1 // pred_check
      _
    $region7: #{nn_gfe_forward.1} parent=1 // pred_check_branch
      %14 = sbr.rel (0) target = $region9
    $region8: #{nn_gfe_forward.1} parent=1 // pred_region
      _
    $region9: #{nn_gfe_forward.1} parent=1 // pred_fallthru
      _
    // Predicated region
    $region10: #{nn_gfe_forward.1} parent=1 // pred_check
      _
    $region11: #{nn_gfe_forward.1} parent=1 // pred_check_branch
      %16 = sbr.rel (0) target = $region13
    $region12: #{nn_gfe_forward.1} parent=1 // pred_region
      _
    $region13: #{nn_gfe_forward.1} parent=1 // pred_fallthru
      _
    // Predicated region
    $region14: #{nn_gfe_forward.1} parent=1 // pred_check
      _
    $region15: #{nn_gfe_forward.1} parent=1 // pred_check_branch
      %18 = sbr.rel (0) target = $region17
    $region16: #{nn_gfe_forward.1} parent=1 // pred_region
      _
    $region17: #{nn_gfe_forward.1} parent=1 // pred_fallthru
      _
    // Predicated region
    $region18: #{nn_gfe_forward.1} parent=1 // pred_check
      _
    $region19: #{nn_gfe_forward.1} parent=1 // pred_check_branch
      %20 = sbr.rel (0) target = $region21
    $region20: #{nn_gfe_forward.1} parent=1 // pred_region
      _
    $region21: #{nn_gfe_forward.1} parent=1 // pred_fallthru
      _
    %v21 = vld [vmem:[%s0] sm:$0xff]
    %v22 = vld [vmem:[%s1] sm:$0xff]
    %v23 = vld [vmem:[%s1 + $0x8] sm:$0xff]
    %v24 = vld [vmem:[%s1 + $0x10] sm:$0xff]
    %v25 = vld [vmem:[%s1 + $0x18] sm:$0xff]
    %v26 = vld [vmem:[%s2] sm:$0x1]
    %v28 = vlaneseq
    %v29 = vshrl.u32 %v28, 7
    %v30 = vsub.s32 0, %v29
    %v31 = vrot.slane %v26, %v30
    %vm33 = vcmask 261120
    %v35 = vsel %vm33, %v21, 0
    %37 = vmatprep.subr.mxu0 0.0
    %38 = vmatpush1.msra.mxu0 %v22
    %39 = vmatprep.subr.mxu0 0.0
    %40 = vmatpush1.msra.mxu0 %v23
    %41 = vmatprep.subr.mxu0 0.0
    %42 = vmatpush1.msra.mxu0 %v24
    %43 = vmatprep.subr.mxu0 0.0
    %44 = vmatpush1.msra.mxu0 %v25
    %45 = vmatprep.subr.mxu0 0.0
    %46 = vmatpush1.msra.mxu0 0.0
    %47 = vmatprep.subr.mxu0 0.0
    %48 = vmatpush1.msra.mxu0 0.0
    %49 = vmatprep.subr.mxu0 0.0
    %50 = vmatpush1.msra.mxu0 0.0
    %51 = vmatprep.subr.mxu0 0.0
    %52 = vmatpush1.msra.mxu0 0.0
    %53 = vmatprep.subr.mxu0 0.0
    %54 = vmatpush1.msra.mxu0 0.0
    %55 = vmatprep.subr.mxu0 0.0
    %56 = vmatpush1.msra.mxu0 0.0
    %57 = vmatprep.subr.mxu0 0.0
    %58 = vmatpush1.msra.mxu0 0.0
    %59 = vmatprep.subr.mxu0 0.0
    %60 = vmatpush1.msra.mxu0 0.0
    %61 = vmatprep.subr.mxu0 0.0
    %62 = vmatpush1.msra.mxu0 0.0
    %63 = vmatprep.subr.mxu0 0.0
    %64 = vmatpush1.msra.mxu0 0.0
    %65 = vmatprep.subr.mxu0 0.0
    %66 = vmatpush1.msra.mxu0 0.0
    %67 = vmatprep.subr.mxu0 0.0
    %68 = vmatpush1.msra.mxu0 0.0
    %69 = vmatprep.subr.mxu0 0.0
    %70 = vmatpush1.msra.mxu0 0.0
    %71 = vmatprep.subr.mxu0 0.0
    %72 = vmatpush1.msra.mxu0 0.0
    %73 = vmatprep.subr.mxu0 0.0
    %74 = vmatpush1.msra.mxu0 0.0
    %75 = vmatprep.subr.mxu0 0.0
    %76 = vmatpush1.msra.mxu0 0.0
    %77 = vmatprep.subr.mxu0 0.0
    %78 = vmatpush1.msra.mxu0 0.0
    %79 = vmatprep.subr.mxu0 0.0
    %80 = vmatpush1.msra.mxu0 0.0
    %81 = vmatprep.subr.mxu0 0.0
    %82 = vmatpush1.msra.mxu0 0.0
    %83 = vmatprep.subr.mxu0 0.0
    %84 = vmatpush1.msra.mxu0 0.0
    %85 = vmatprep.subr.mxu0 0.0
    %86 = vmatpush1.msra.mxu0 0.0
    %87 = vmatprep.subr.mxu0 0.0
    %88 = vmatpush1.msra.mxu0 0.0
    %89 = vmatprep.subr.mxu0 0.0
    %90 = vmatpush1.msra.mxu0 0.0
    %91 = vmatprep.subr.mxu0 0.0
    %92 = vmatpush1.msra.mxu0 0.0
    %93 = vmatprep.subr.mxu0 0.0
    %94 = vmatpush1.msra.mxu0 0.0
    %95 = vmatprep.subr.mxu0 0.0
    %96 = vmatpush1.msra.mxu0 0.0
    %97 = vmatprep.subr.mxu0 0.0
    %98 = vmatpush1.msra.mxu0 0.0
    %99 = vmatprep.subr.mxu0 0.0
    %100 = vmatpush1.msra.mxu0 0.0
    %101 = vmatprep.mubr.f32.mxu0 0.0
    %102 = vmatmul.mubr.f32.gmra.mrb[0].mxu0 %v35
    %v103 = vpop.f32.mrb[0].mxu0
    %v104 = vadd.f32 %v31, %v103
    %v105 = vpop.f32.mrb[0].mxu0
    %106 = vdwg.mxu0
    %v107 = vmul.f32 %v104, 0.5
    %v108 = vtanh.pop %v107
    %v109 = vmul.f32 %v108, 0.5
    %v110 = vadd.f32 %v109, 0.5
    %v111 = vld [vmem:[%s3] sm:$0xff]
    %v112 = vld [vmem:[%s3 + $0x8] sm:$0xff]
    %v113 = vld [vmem:[%s3 + $0x10] sm:$0xff]
    %v114 = vld [vmem:[%s3 + $0x18] sm:$0xff]
    %v115 = vld [vmem:[%s3 + $0x20] sm:$0xff]
    %v116 = vld [vmem:[%s3 + $0x28] sm:$0xff]
    %v117 = vld [vmem:[%s3 + $0x30] sm:$0xff]
    %v118 = vld [vmem:[%s3 + $0x38] sm:$0xff]
    %v119 = vld [vmem:[%s4] sm:$0x1]
    %v121 = vlaneseq
    %v122 = vshrl.u32 %v121, 7
    %v123 = vsub.s32 0, %v122
    %v124 = vrot.slane %v119, %v123
    %vm126 = vcmask 523264
    %v128 = vsel %vm126, %v110, 0
    %130 = vmatprep.subr.mxu0 0.0
    %131 = vmatpush1.msra.mxu0 %v111
    %132 = vmatprep.subr.mxu0 0.0
    %133 = vmatpush1.msra.mxu0 %v112
    %134 = vmatprep.subr.mxu0 0.0
    %135 = vmatpush1.msra.mxu0 %v113
    %136 = vmatprep.subr.mxu0 0.0
    %137 = vmatpush1.msra.mxu0 %v114
    %138 = vmatprep.subr.mxu0 0.0
    %139 = vmatpush1.msra.mxu0 %v115
    %140 = vmatprep.subr.mxu0 0.0
    %141 = vmatpush1.msra.mxu0 %v116
    %142 = vmatprep.subr.mxu0 0.0
    %143 = vmatpush1.msra.mxu0 %v117
    %144 = vmatprep.subr.mxu0 0.0
    %145 = vmatpush1.msra.mxu0 %v118
    %146 = vmatprep.subr.mxu0 0.0
    %147 = vmatpush1.msra.mxu0 0.0
    %148 = vmatprep.subr.mxu0 0.0
    %149 = vmatpush1.msra.mxu0 0.0
    %150 = vmatprep.subr.mxu0 0.0
    %151 = vmatpush1.msra.mxu0 0.0
    %152 = vmatprep.subr.mxu0 0.0
    %153 = vmatpush1.msra.mxu0 0.0
    %154 = vmatprep.subr.mxu0 0.0
    %155 = vmatpush1.msra.mxu0 0.0
    %156 = vmatprep.subr.mxu0 0.0
    %157 = vmatpush1.msra.mxu0 0.0
    %158 = vmatprep.subr.mxu0 0.0
    %159 = vmatpush1.msra.mxu0 0.0
    %160 = vmatprep.subr.mxu0 0.0
    %161 = vmatpush1.msra.mxu0 0.0
    %162 = vmatprep.subr.mxu0 0.0
    %163 = vmatpush1.msra.mxu0 0.0
    %164 = vmatprep.subr.mxu0 0.0
    %165 = vmatpush1.msra.mxu0 0.0
    %166 = vmatprep.subr.mxu0 0.0
    %167 = vmatpush1.msra.mxu0 0.0
    %168 = vmatprep.subr.mxu0 0.0
    %169 = vmatpush1.msra.mxu0 0.0
    %170 = vmatprep.subr.mxu0 0.0
    %171 = vmatpush1.msra.mxu0 0.0
    %172 = vmatprep.subr.mxu0 0.0
    %173 = vmatpush1.msra.mxu0 0.0
    %174 = vmatprep.subr.mxu0 0.0
    %175 = vmatpush1.msra.mxu0 0.0
    %176 = vmatprep.subr.mxu0 0.0
    %177 = vmatpush1.msra.mxu0 0.0
    %178 = vmatprep.subr.mxu0 0.0
    %179 = vmatpush1.msra.mxu0 0.0
    %180 = vmatprep.subr.mxu0 0.0
    %181 = vmatpush1.msra.mxu0 0.0
    %182 = vmatprep.subr.mxu0 0.0
    %183 = vmatpush1.msra.mxu0 0.0
    %184 = vmatprep.subr.mxu0 0.0
    %185 = vmatpush1.msra.mxu0 0.0
    %186 = vmatprep.subr.mxu0 0.0
    %187 = vmatpush1.msra.mxu0 0.0
    %188 = vmatprep.subr.mxu0 0.0
    %189 = vmatpush1.msra.mxu0 0.0
    %190 = vmatprep.subr.mxu0 0.0
    %191 = vmatpush1.msra.mxu0 0.0
    %192 = vmatprep.subr.mxu0 0.0
    %193 = vmatpush1.msra.mxu0 0.0
    %194 = vmatprep.mubr.f32.mxu0 0.0
    %195 = vmatmul.mubr.f32.gmra.mrb[0].mxu0 %v128
    %v196 = vpop.f32.mrb[0].mxu0
    %v197 = vadd.f32 %v124, %v196
    %v198 = vpop.f32.mrb[0].mxu0
    %199 = vdwg.mxu0
    %vm200 = vcmask 130048
    %201 = vst.msk [vmem:[#allocation2] sm:$0xff] %vm200, %v197
    // Predicated region
    $region22: #{nn_gfe_forward.1} parent=1 // pred_check
      _
    $region23: #{nn_gfe_forward.1} parent=1 // pred_check_branch
      %203 = sbr.rel (0) target = $region25
    $region24: #{nn_gfe_forward.1} parent=1 // pred_region
      %s205 = ssub.s32 128, 128
      %206 = vsyncadd [#allocation3], %s205
      %s208 = sshll.u32 [#allocation2], 4
      %s209 = int_to_ptr.vmem [resolvable:$true] %s208
      %211 = dma.vmem_to_hbm [thread:$0]  %s209, 128, %s5, [#allocation3]
    $region25: #{nn_gfe_forward.1} parent=1 // pred_fallthru
      _
    // Predicated region
    $region26: #{nn_gfe_forward.1} parent=1 // pred_check
      _
    $region27: #{nn_gfe_forward.1} parent=1 // pred_check_branch
      %213 = sbr.rel (0) target = $region29
    $region28: #{nn_gfe_forward.1} parent=1 // pred_region
      %214 = dma.done [#allocation3], 128
    $region29: #{nn_gfe_forward.1} parent=1 // pred_fallthru
      _
    %215 = vsyncpa [#allocation3], 1

</llo_original>
